<compile_context>
chip_gen: v7x
topology: tpu7x:2x2x1
jax: 0.10.0
libtpu: 0.0.40
codegen_flags: <defaults>
</compile_context>

<pallas_src>
import functools

import jax
import jax.numpy as jnp
from jax.experimental import pallas as pl
from jax.experimental.pallas import tpu as pltpu

_MIB = 1024 * 1024


def _max_depth_pool_kernel(x_ref, o_ref, *, pool_size, hw):
    """Group-max over channels.

    x_ref: (rows_tile, pool_size * hw) -- row r holds the pool_size input channels
           belonging to output row r, contiguous along lanes (hw is a multiple of 128).
    o_ref: (rows_tile, hw)
    """
    acc = x_ref[:, pl.ds(0, hw)]
    for p in range(1, pool_size):
        acc = jnp.maximum(acc, x_ref[:, pl.ds(p * hw, hw)])
    o_ref[...] = acc


def _select_tiling_params(pool_size):
    """Per-generation scoped-VMEM limit and target input-tile size (bytes)."""
    try:
        vmem_cap = int(pltpu.get_tpu_info().vmem_capacity_bytes)
    except Exception:
        vmem_cap = 64 * _MIB  # conservative fallback (v7x-sized VMEM)
    vmem_limit = min((vmem_cap * 3) // 4, 64 * _MIB)  # 48 MiB on v7x, 64 MiB on v5e/v6e
    # Double-buffered footprint per input-tile byte: 2*in + 2*out = 2 + 2/pool_size.
    footprint = 2.0 + 2.0 / pool_size
    target_tile = int(vmem_limit / footprint * (2.0 / 3.0))  # ~1/3 headroom for scratch
    target_tile = max(2 * _MIB, min(target_tile, 16 * _MIB))
    return vmem_limit, target_tile


def max_depth_pool2d(x, pool_size=2):
    """Pallas TPU equivalent of MaxDepthPool2d.forward (NCHW input)."""
    B, C, H, W = x.shape
    assert C % pool_size == 0, "channels must be divisible by pool_size"
    C_out = C // pool_size
    HW = H * W
    R = B * C_out  # flattened (batch, out-channel) rows

    itemsize = jnp.dtype(x.dtype).itemsize
    sub_mult = 8 * max(1, 4 // max(1, itemsize))  # 8 (f32) / 16 (bf16) / 32 (int8)

    # Lane alignment: pad HW to a multiple of 128 so pool slices are aligned and
    # output stores are full-lane.  No-op (metadata reshape) when HW % 128 == 0.
    HW_pad = ((HW + 127) // 128) * 128
    if HW_pad != HW:
        x3 = x.reshape(R, pool_size, HW)
        x3 = jnp.pad(x3, ((0, 0), (0, 0), (0, HW_pad - HW)))
        x3 = x3.reshape(R, pool_size * HW_pad)
    else:
        x3 = x.reshape(R, pool_size * HW)

    vmem_limit, target_tile_bytes = _select_tiling_params(pool_size)

    # Row-block size: as many rows as fit the target tile, rounded to the sublane
    # multiple; ensure >= 2 grid blocks (v7x has 2 TensorCores) when a legal split exists.
    row_bytes = pool_size * HW_pad * itemsize
    budget_rows = max(1, target_tile_bytes // row_bytes)
    if R <= sub_mult:
        rows_tile = R  # equals full dim -> always a legal block shape
    else:
        rows_tile = min(R, max(sub_mult, (budget_rows // sub_mult) * sub_mult))
        if rows_tile >= R and R >= 2 * sub_mult:
            half = -(-R // 2)
            rows_tile = ((half + sub_mult - 1) // sub_mult) * sub_mult

    grid = (pl.cdiv(R, rows_tile),)

    in_spec = pl.BlockSpec((rows_tile, pool_size * HW_pad), lambda i: (i, 0))
    out_spec = pl.BlockSpec((rows_tile, HW_pad), lambda i: (i, 0))

    cost = pl.CostEstimate(
        flops=R * (pool_size - 1) * HW_pad,
        transcendentals=0,
        bytes_accessed=(R * pool_size * HW_pad + R * HW_pad) * itemsize,
    )

    kernel = functools.partial(_max_depth_pool_kernel, pool_size=pool_size, hw=HW_pad)

    out = pl.pallas_call(
        kernel,
        out_shape=jax.ShapeDtypeStruct((R, HW_pad), x.dtype),
        grid_spec=pltpu.PrefetchScalarGridSpec(
            num_scalar_prefetch=0,
            grid=grid,
            in_specs=[in_spec],
            out_specs=out_spec,
        ),
        compiler_params=pltpu.CompilerParams(
            dimension_semantics=("parallel",),
            vmem_limit_bytes=vmem_limit,
        ),
        cost_estimate=cost,
    )(x3)

    if HW_pad != HW:
        out = out[:, :HW]
    return out.reshape(B, C_out, H, W)


if __name__ == "__main__":
    key = jax.random.PRNGKey(0)
    B, C, H, W = 2, 4, 16, 16
    pool_size = 2

    x = jax.random.normal(key, (B, C, H, W), dtype=jnp.float32)

    out = max_depth_pool2d(x, pool_size=pool_size)
    out = jax.block_until_ready(out)

    # Reference: mirrors torch.amax(x.view(B, C//p, p, H, W), dim=2)
    ref = jnp.max(x.reshape(B, C // pool_size, pool_size, H, W), axis=2)
    assert out.shape == (B, C // pool_size, H, W)
    assert jnp.array_equal(out, ref), "mismatch vs reference"

    print("KERNEL_OK")
</pallas_src>

<mosaic_0001>
module attributes {stable_mosaic.version = 11 : i64} {
  func.func @_max_depth_pool_kernel(%arg0: i32, %arg1: memref<4x512xf32, #tpu.memory_space<vmem>>, %arg2: memref<4x256xf32, #tpu.memory_space<vmem>>) attributes {dimension_semantics = [#tpu.dimension_semantics<parallel>], iteration_bounds = array<i64: 1>, scalar_prefetch = 0 : i64, scratch_operands = 0 : i64, tpu.core_type = #tpu.core_type<tc>, window_params = [{transform_indices = @transform_0, window_bounds = array<i64: 4, 512>}, {transform_indices = @transform_1, window_bounds = array<i64: 4, 256>}]} {
    %c0 = arith.constant 0 : index
    %c0_0 = arith.constant 0 : index
    %0 = vector.load %arg1[%c0, %c0_0] : memref<4x512xf32, #tpu.memory_space<vmem>>, vector<4x256xf32>
    %c0_1 = arith.constant 0 : index
    %c256 = arith.constant 256 : index
    %1 = vector.load %arg1[%c0_1, %c256] : memref<4x512xf32, #tpu.memory_space<vmem>>, vector<4x256xf32>
    %2 = arith.maximumf %0, %1 : vector<4x256xf32>
    %c0_2 = arith.constant 0 : index
    %c0_3 = arith.constant 0 : index
    %3 = vector.load %arg2[%c0_2, %c0_3] : memref<4x256xf32, #tpu.memory_space<vmem>>, vector<4x256xf32>
    tpu.vector_store %arg2[%c0_2, %c0_3], %2 {strides = array<i32>} : memref<4x256xf32, #tpu.memory_space<vmem>>, vector<4x256xf32>,
    return
  }
  func.func @transform_0(%arg0: i32) -> (i32, i32) {
    %c0_i32 = arith.constant 0 : i32
    %c0_i32_0 = arith.constant 0 : i32
    return %arg0, %c0_i32 : i32, i32
  }
  func.func @transform_1(%arg0: i32) -> (i32, i32) {
    %c0_i32 = arith.constant 0 : i32
    %c0_i32_0 = arith.constant 0 : i32
    return %arg0, %c0_i32 : i32, i32
  }
}

</mosaic_0001>

<llo_original>
// kernel: tpu_custom_call.1
$region0: #{tpu_custom_call.1}
  #allocation0 [shape = 'u32[]', space=smem, size = 0x4, offset = 0x4, fixed_abs, tag = 'smem constant byte address 0x4 - core index']
  #allocation1 [shape = 'u32[144,128]{1,0:T(1,128)}', space=vmem, size = 0x12000, scoped, tag = 'internal scratch']
  %s0 = inlined_call_operand.hbm [shape: f32[4,512], index: 0, kind: input, shape index: {}]
  %s1 = inlined_call_operand.hbm [shape: f32[4,256], index: 1, kind: output, shape index: {}]
  %s2 = sld [smem:[#allocation0]]
  $region18: #{tpu_custom_call.1} parent=0
    _
  %s4 = ssub.s32 1, %s2
  %s5 = scalar_select 0, %s4, %s2
  $region1: #{tpu_custom_call.1} parent=0
    #allocation2 [shape = 'u8[8192]{0}', space=vmem, size = 0x2000, scoped, tag = 'input window, operand 0, single buffered']
    #allocation3 [shape = 's32[1]{0}', space=sflag, size = 0x4, scoped, tag = 'scoped memory for tpu_custom_call.1']
    #allocation4 [shape = 's32[1]{0}', space=sflag, size = 0x4, scoped, tag = 'scoped memory for tpu_custom_call.1']
    #allocation5 [shape = 'u8[4096]{0}', space=vmem, size = 0x1000, scoped, tag = 'output window, operand 0, single buffered']
    %6 = vsyncpa [#allocation3], 0
    %7 = vsyncpa [#allocation4], 0
    // Predicated region
    $region2: #{tpu_custom_call.1} parent=1 // pred_check
      _
    $region3: #{tpu_custom_call.1} parent=1 // pred_check_branch
      %9 = sbr.rel (0) target = $region5
    $region4: #{tpu_custom_call.1} parent=1 // pred_region
      %s11 = ssub.s32 256, 256
      %12 = vsyncadd [#allocation3], %s11
      %s14 = sshll.u32 [#allocation2], 4
      %s15 = int_to_ptr.vmem [resolvable:$true] %s14
      %17 = dma.hbm_to_vmem [thread:$0]  %s0, 256, %s15, [#allocation3]
    $region5: #{tpu_custom_call.1} parent=1 // pred_fallthru
      _
    // Predicated region
    $region6: #{tpu_custom_call.1} parent=1 // pred_check
      _
    $region7: #{tpu_custom_call.1} parent=1 // pred_check_branch
      %19 = sbr.rel (0) target = $region9
    $region8: #{tpu_custom_call.1} parent=1 // pred_region
      %20 = dma.done [#allocation3], 256
    $region9: #{tpu_custom_call.1} parent=1 // pred_fallthru
      _
    %v21 = vld [vmem:[#allocation2] sm:$0xff]
    %v22 = vld [vmem:[#allocation2 + $0x8] sm:$0xff]
    %v23 = vmax.f32 %v21, %v22
    %24 = vst [vmem:[#allocation5] sm:$0xff] %v23
    // Predicated region
    $region10: #{tpu_custom_call.1} parent=1 // pred_check
      _
    $region11: #{tpu_custom_call.1} parent=1 // pred_check_branch
      %26 = sbr.rel (0) target = $region13
    $region12: #{tpu_custom_call.1} parent=1 // pred_region
      %s28 = ssub.s32 128, 128
      %29 = vsyncadd [#allocation4], %s28
      %s31 = sshll.u32 [#allocation5], 4
      %s32 = int_to_ptr.vmem [resolvable:$true] %s31
      %34 = dma.vmem_to_hbm [thread:$0]  %s32, 128, %s1, [#allocation4]
    $region13: #{tpu_custom_call.1} parent=1 // pred_fallthru
      _
    // Predicated region
    $region14: #{tpu_custom_call.1} parent=1 // pred_check
      _
    $region15: #{tpu_custom_call.1} parent=1 // pred_check_branch
      %36 = sbr.rel (0) target = $region17
    $region16: #{tpu_custom_call.1} parent=1 // pred_region
      %37 = dma.done [#allocation4], 128
    $region17: #{tpu_custom_call.1} parent=1 // pred_fallthru
      _
    %38 = vsyncpa [#allocation3], 1
    %39 = vsyncpa [#allocation4], 1

</llo_original>
